<compile_context>
chip_gen: v6e
topology: v6e:2x2x1
jax: 0.10.0
libtpu: 0.0.40
codegen_flags: <defaults>
</compile_context>

<pallas_src>
import jax
import jax.numpy as jnp
from jax.experimental import pallas as pl
from jax.experimental.pallas import tpu as pltpu


def _dynamics_kernel(z_ref, a_ref, w1_ref, b1_ref, w2_ref, b2_ref,
                     w3_ref, b3_ref, o_ref):
    # Layer 1: in-kernel concat (XLU) + single fused MXU pass, f32 accumulation.
    x = jnp.concatenate([z_ref[...], a_ref[...]], axis=-1)
    h1 = (jnp.dot(x.astype(w1_ref.dtype), w1_ref[...],
                  preferred_element_type=jnp.float32)
          + b1_ref[...])
    h1 = jnp.maximum(h1, 0.0)                               # f32 ReLU (VPU)
    # Layer 2
    h2 = (jnp.dot(h1.astype(w2_ref.dtype), w2_ref[...],
                  preferred_element_type=jnp.float32)
          + b2_ref[...])
    h2 = jnp.maximum(h2, 0.0)                               # f32 ReLU (VPU)
    # Layer 3: next-latent prediction
    o = (jnp.dot(h2.astype(w3_ref.dtype), w3_ref[...],
                 preferred_element_type=jnp.float32)
         + b3_ref[...])
    o_ref[...] = o.astype(o_ref.dtype)                      # (block_b, latent_dim)


def _round_up(x, m):
    return ((x + m - 1) // m) * m


def dynamics_forward(z, a, params, *, max_block_b=512,
                     compute_dtype=jnp.bfloat16):
    """Pallas equivalent of DynamicsModel.forward(z, a) -> next z, shape [B, latent_dim]."""
    B, latent_dim = z.shape
    _, action_dim = a.shape
    w1, b1, w2, b2, w3, b3 = params
    hid = w1.shape[1]

    # bf16 (or f32) MXU operands; biases stay f32 (accumulation is f32 anyway).
    w1c = w1.astype(compute_dtype)
    w2c = w2.astype(compute_dtype)
    w3c = w3.astype(compute_dtype)
    wbytes = jnp.dtype(compute_dtype).itemsize

    # Batch tile: big enough to amortize per-step overhead, but >= 2 grid steps
    # whenever B > 8 so both v7x TensorCores are used.  No wrapper padding:
    # Pallas masks the trailing partial block.
    block_b = min(max_block_b, _round_up(pl.cdiv(B, 2), 8))
    grid = (pl.cdiv(B, block_b),)

    flops = 2 * B * ((latent_dim + action_dim) * hid + hid * hid + hid * latent_dim)
    bytes_accessed = (4 * B * (2 * latent_dim + action_dim)
                      + wbytes * ((latent_dim + action_dim) * hid
                                  + hid * hid + hid * latent_dim)
                      + 4 * (2 * hid + latent_dim))

    # Constant-index BlockSpecs: weights/biases DMA'd once, VMEM-resident
    # across the whole grid.  (pipeline_mode=pl.Buffered(1) would halve their
    # double-buffered VMEM; irrelevant at this size, so omitted.)
    full = lambda r, c: pl.BlockSpec((r, c), lambda i: (0, 0))

    out = pl.pallas_call(
        _dynamics_kernel,
        out_shape=jax.ShapeDtypeStruct((B, latent_dim), jnp.float32),
        grid_spec=pl.GridSpec(
            grid=grid,
            in_specs=[
                pl.BlockSpec((block_b, latent_dim), lambda i: (i, 0)),   # z tile
                pl.BlockSpec((block_b, action_dim), lambda i: (i, 0)),   # a tile
                full(latent_dim + action_dim, hid),                      # W1 (merged)
                full(1, hid),                                            # b1
                full(hid, hid),                                          # W2
                full(1, hid),                                            # b2
                full(hid, latent_dim),                                   # W3
                full(1, latent_dim),                                     # b3
            ],
            out_specs=pl.BlockSpec((block_b, latent_dim), lambda i: (i, 0)),
        ),
        compiler_params=pltpu.CompilerParams(
            dimension_semantics=("parallel",),
        ),
        cost_estimate=pl.CostEstimate(
            flops=flops, transcendentals=0, bytes_accessed=bytes_accessed),
    )(z, a, w1c, b1, w2c, b2, w3c, b3)

    return out


def init_dynamics_params(key, latent_dim, action_dim, hidden=256):
    """Deterministic synthetic parameters (f32 master copy); W1 is pre-merged."""
    k1, k2, k3 = jax.random.split(key, 3)
    scale = 0.1
    # stored as [in, out] (transposed vs torch's [out, in])
    w1 = scale * jax.random.normal(k1, (latent_dim + action_dim, hidden), jnp.float32)
    b1 = jnp.zeros((1, hidden), jnp.float32)
    w2 = scale * jax.random.normal(k2, (hidden, hidden), jnp.float32)
    b2 = jnp.zeros((1, hidden), jnp.float32)
    w3 = scale * jax.random.normal(k3, (hidden, latent_dim), jnp.float32)
    b3 = jnp.zeros((1, latent_dim), jnp.float32)
    return (w1, b1, w2, b2, w3, b3)


def dynamics_reference(z, a, params):
    """Pure-JAX f32 reference (identical math to the nn.Sequential)."""
    w1, b1, w2, b2, w3, b3 = params
    x = jnp.concatenate([z, a], axis=-1)
    h = jnp.maximum(x @ w1 + b1, 0.0)
    h = jnp.maximum(h @ w2 + b2, 0.0)
    return h @ w3 + b3


if __name__ == "__main__":
    key = jax.random.PRNGKey(0)
    k_z, k_a, k_p = jax.random.split(key, 3)

    batch, latent_dim, action_dim = 16, 16, 8
    z = jax.random.normal(k_z, (batch, latent_dim), jnp.float32)
    a = jax.random.normal(k_a, (batch, action_dim), jnp.float32)
    params = init_dynamics_params(k_p, latent_dim, action_dim)

    z_ref = dynamics_reference(z, a, params)

    # Exact-precision path (f32 operands): must match the reference tightly.
    z_f32 = jax.block_until_ready(
        dynamics_forward(z, a, params, compute_dtype=jnp.float32))
    assert z_f32.shape == (batch, latent_dim)
    assert jnp.allclose(z_f32, z_ref, atol=1e-5, rtol=1e-5), "f32 path mismatch"

    # Fast path (bf16 MXU operands, f32 accumulation): loose tolerance.
    z_next = jax.block_until_ready(dynamics_forward(z, a, params))
    assert z_next.shape == (batch, latent_dim)
    assert jnp.allclose(z_next, z_ref, atol=2e-2, rtol=2e-2), "bf16 path mismatch"

    print("KERNEL_OK")
</pallas_src>

<mosaic_0001>
module attributes {stable_mosaic.version = 11 : i64} {
  func.func @_dynamics_kernel(%arg0: i32, %arg1: memref<8x16xf32, #tpu.memory_space<vmem>>, %arg2: memref<8x8xf32, #tpu.memory_space<vmem>>, %arg3: memref<24x256xf32, #tpu.memory_space<vmem>>, %arg4: memref<1x256xf32, #tpu.memory_space<vmem>>, %arg5: memref<256x256xf32, #tpu.memory_space<vmem>>, %arg6: memref<1x256xf32, #tpu.memory_space<vmem>>, %arg7: memref<256x16xf32, #tpu.memory_space<vmem>>, %arg8: memref<1x16xf32, #tpu.memory_space<vmem>>, %arg9: memref<8x16xf32, #tpu.memory_space<vmem>>) attributes {dimension_semantics = [#tpu.dimension_semantics<parallel>], iteration_bounds = array<i64: 2>, scalar_prefetch = 0 : i64, scratch_operands = 0 : i64, tpu.core_type = #tpu.core_type<tc>, window_params = [{transform_indices = @transform_0, window_bounds = array<i64: 8, 16>}, {transform_indices = @transform_1, window_bounds = array<i64: 8, 8>}, {pipeline_mode = #tpu.pipeline_mode<synchronous>, transform_indices = @transform_2, window_bounds = array<i64: 24, 256>}, {pipeline_mode = #tpu.pipeline_mode<synchronous>, transform_indices = @transform_3, window_bounds = array<i64: 1, 256>}, {pipeline_mode = #tpu.pipeline_mode<synchronous>, transform_indices = @transform_4, window_bounds = array<i64: 256, 256>}, {pipeline_mode = #tpu.pipeline_mode<synchronous>, transform_indices = @transform_5, window_bounds = array<i64: 1, 256>}, {pipeline_mode = #tpu.pipeline_mode<synchronous>, transform_indices = @transform_6, window_bounds = array<i64: 256, 16>}, {pipeline_mode = #tpu.pipeline_mode<synchronous>, transform_indices = @transform_7, window_bounds = array<i64: 1, 16>}, {transform_indices = @transform_8, window_bounds = array<i64: 8, 16>}]} {
    %c0 = arith.constant 0 : index
    %c0_0 = arith.constant 0 : index
    %0 = vector.load %arg1[%c0, %c0_0] : memref<8x16xf32, #tpu.memory_space<vmem>>, vector<8x16xf32>
    %c0_1 = arith.constant 0 : index
    %c0_2 = arith.constant 0 : index
    %1 = vector.load %arg2[%c0_1, %c0_2] : memref<8x8xf32, #tpu.memory_space<vmem>>, vector<8x8xf32>
    %2 = tpu.concatenate %0, %1 in 1 : vector<8x16xf32>, vector<8x8xf32> -> vector<8x24xf32>
    %c0_3 = arith.constant 0 : index
    %c0_4 = arith.constant 0 : index
    %3 = vector.load %arg3[%c0_3, %c0_4] : memref<24x256xf32, #tpu.memory_space<vmem>>, vector<24x256xf32>
    %cst = arith.constant dense<0.000000e+00> : vector<8x256xf32>
    %4 = tpu.matmul %2, %3, %cst {dimension_numbers = #tpu.dot_dimension_numbers<[1], [0], [0], [1], [0, 0, 1, 1], [], []>} : vector<8x24xf32>, vector<24x256xf32>, vector<8x256xf32> -> vector<8x256xf32>
    %c0_5 = arith.constant 0 : index
    %c0_6 = arith.constant 0 : index
    %5 = vector.load %arg4[%c0_5, %c0_6] : memref<1x256xf32, #tpu.memory_space<vmem>>, vector<1x256xf32>
    %6 = vector.broadcast %5 : vector<1x256xf32> to vector<8x256xf32>
    %7 = arith.addf %4, %6 : vector<8x256xf32>
    %cst_7 = arith.constant 0.000000e+00 : f32
    %8 = vector.broadcast %cst_7 : f32 to vector<8x256xf32>
    %9 = arith.maximumf %7, %8 : vector<8x256xf32>
    %c0_8 = arith.constant 0 : index
    %c0_9 = arith.constant 0 : index
    %10 = vector.load %arg5[%c0_8, %c0_9] : memref<256x256xf32, #tpu.memory_space<vmem>>, vector<256x256xf32>
    %cst_10 = arith.constant dense<0.000000e+00> : vector<8x256xf32>
    %11 = tpu.matmul %9, %10, %cst_10 {dimension_numbers = #tpu.dot_dimension_numbers<[1], [0], [0], [1], [0, 0, 1, 1], [], []>} : vector<8x256xf32>, vector<256x256xf32>, vector<8x256xf32> -> vector<8x256xf32>
    %c0_11 = arith.constant 0 : index
    %c0_12 = arith.constant 0 : index
    %12 = vector.load %arg6[%c0_11, %c0_12] : memref<1x256xf32, #tpu.memory_space<vmem>>, vector<1x256xf32>
    %13 = vector.broadcast %12 : vector<1x256xf32> to vector<8x256xf32>
    %14 = arith.addf %11, %13 : vector<8x256xf32>
    %cst_13 = arith.constant 0.000000e+00 : f32
    %15 = vector.broadcast %cst_13 : f32 to vector<8x256xf32>
    %16 = arith.maximumf %14, %15 : vector<8x256xf32>
    %c0_14 = arith.constant 0 : index
    %c0_15 = arith.constant 0 : index
    %17 = vector.load %arg7[%c0_14, %c0_15] : memref<256x16xf32, #tpu.memory_space<vmem>>, vector<256x16xf32>
    %cst_16 = arith.constant dense<0.000000e+00> : vector<8x16xf32>
    %18 = tpu.matmul %16, %17, %cst_16 {dimension_numbers = #tpu.dot_dimension_numbers<[1], [0], [0], [1], [0, 0, 1, 1], [], []>} : vector<8x256xf32>, vector<256x16xf32>, vector<8x16xf32> -> vector<8x16xf32>
    %c0_17 = arith.constant 0 : index
    %c0_18 = arith.constant 0 : index
    %19 = vector.load %arg8[%c0_17, %c0_18] : memref<1x16xf32, #tpu.memory_space<vmem>>, vector<1x16xf32>
    %20 = vector.broadcast %19 : vector<1x16xf32> to vector<8x16xf32>
    %21 = arith.addf %18, %20 : vector<8x16xf32>
    %c0_19 = arith.constant 0 : index
    %c0_20 = arith.constant 0 : index
    %22 = vector.load %arg9[%c0_19, %c0_20] : memref<8x16xf32, #tpu.memory_space<vmem>>, vector<8x16xf32>
    tpu.vector_store %arg9[%c0_19, %c0_20], %21 {strides = array<i32>} : memref<8x16xf32, #tpu.memory_space<vmem>>, vector<8x16xf32>,
    return
  }
  func.func @transform_0(%arg0: i32) -> (i32, i32) {
    %c0_i32 = arith.constant 0 : i32
    %c0_i32_0 = arith.constant 0 : i32
    return %arg0, %c0_i32 : i32, i32
  }
  func.func @transform_1(%arg0: i32) -> (i32, i32) {
    %c0_i32 = arith.constant 0 : i32
    %c0_i32_0 = arith.constant 0 : i32
    return %arg0, %c0_i32 : i32, i32
  }
  func.func @transform_2(%arg0: i32) -> (i32, i32) {
    %c0_i32 = arith.constant 0 : i32
    %c0_i32_0 = arith.constant 0 : i32
    %c0_i32_1 = arith.constant 0 : i32
    return %c0_i32, %c0_i32_0 : i32, i32
  }
  func.func @transform_3(%arg0: i32) -> (i32, i32) {
    %c0_i32 = arith.constant 0 : i32
    %c0_i32_0 = arith.constant 0 : i32
    %c0_i32_1 = arith.constant 0 : i32
    return %c0_i32, %c0_i32_0 : i32, i32
  }
  func.func @transform_4(%arg0: i32) -> (i32, i32) {
    %c0_i32 = arith.constant 0 : i32
    %c0_i32_0 = arith.constant 0 : i32
    %c0_i32_1 = arith.constant 0 : i32
    return %c0_i32, %c0_i32_0 : i32, i32
  }
  func.func @transform_5(%arg0: i32) -> (i32, i32) {
    %c0_i32 = arith.constant 0 : i32
    %c0_i32_0 = arith.constant 0 : i32
    %c0_i32_1 = arith.constant 0 : i32
    return %c0_i32, %c0_i32_0 : i32, i32
  }
  func.func @transform_6(%arg0: i32) -> (i32, i32) {
    %c0_i32 = arith.constant 0 : i32
    %c0_i32_0 = arith.constant 0 : i32
    %c0_i32_1 = arith.constant 0 : i32
    return %c0_i32, %c0_i32_0 : i32, i32
  }
  func.func @transform_7(%arg0: i32) -> (i32, i32) {
    %c0_i32 = arith.constant 0 : i32
    %c0_i32_0 = arith.constant 0 : i32
    %c0_i32_1 = arith.constant 0 : i32
    return %c0_i32, %c0_i32_0 : i32, i32
  }
  func.func @transform_8(%arg0: i32) -> (i32, i32) {
    %c0_i32 = arith.constant 0 : i32
    %c0_i32_0 = arith.constant 0 : i32
    return %arg0, %c0_i32 : i32, i32
  }
}

</mosaic_0001>

<llo_original>
// kernel: tpu_custom_call.1
$region0: #{tpu_custom_call.1}
  #allocation0 [shape = 'u32[]', space=smem, size = 0x4, offset = 0x4, fixed_abs, tag = 'smem constant byte address 0x4 - core index']
  #allocation1 [shape = 'u32[144,128]{1,0:T(1,128)}', space=vmem, size = 0x12000, scoped, tag = 'internal scratch']
  %s0 = inlined_call_operand.vmem [shape: f32[16,16], index: 0, kind: input, shape index: {}]
  %s1 = inlined_call_operand.vmem [shape: f32[16,8], index: 1, kind: input, shape index: {}]
  %s2 = inlined_call_operand.vmem [shape: f32[24,256], index: 2, kind: input, shape index: {}]
  %s3 = inlined_call_operand.vmem [shape: f32[1,256], index: 3, kind: input, shape index: {}]
  %s4 = inlined_call_operand.hbm [shape: f32[256,256], index: 4, kind: input, shape index: {}]
  %s5 = inlined_call_operand.vmem [shape: f32[1,256], index: 5, kind: input, shape index: {}]
  %s6 = inlined_call_operand.vmem [shape: f32[256,16], index: 6, kind: input, shape index: {}]
  %s7 = inlined_call_operand.vmem [shape: f32[1,16], index: 7, kind: input, shape index: {}]
  %s8 = inlined_call_operand.hbm [shape: f32[16,16], index: 8, kind: output, shape index: {}]
  %s9 = sld [smem:[#allocation0]]
  $region69: #{tpu_custom_call.1} parent=0
    _
  %s11 = ssub.s32 1, %s9
  %s12 = scalar_select 0, %s11, %s9
  $region1: #{tpu_custom_call.1} parent=0
    #allocation2 [shape = 'u8[262144]{0}', space=vmem, size = 0x40000, scoped, tag = 'input window, operand 4, single buffered']
    #allocation3 [shape = 's32[2]{0}', space=sflag, size = 0x8, scoped, tag = 'scoped memory for tpu_custom_call.1']
    #allocation4 [shape = 's32[2]{0}', space=sflag, size = 0x8, scoped, tag = 'scoped memory for tpu_custom_call.1']
    #allocation5 [shape = 'u8[8192]{0}', space=vmem, size = 0x2000, scoped, tag = 'output window, operand 0']
    %13 = vsyncpa [#allocation3], 0
    %14 = vsyncpa [#allocation4], 0
    %s15 = scalar_lea.sflag [#allocation4], 1
    %16 = vsyncpa %s15, 0
    loop: start=0, step=1, limit=4
    $region2: #{tpu_custom_call.1} parent=1 // loop_pre_header
      _
    $region3: #{tpu_custom_call.1} parent=1 // loop_header
      %s18 = sphi 0, %s22
      %p19 = scmp.ge.s32.totalorder %s18, 4
      %s28 = sphi 0, %s30
      %s31 = sphi 0, %s28
      %s32 = sphi 0, %s31
      %s48 = sphi 0, %s32
      %s54 = sphi 0, %s56
      %s57 = sphi 0, %s54
      %s58 = sphi 0, %s57
      %s74 = sphi 0, %s58
      %s78 = sphi 0, %s78
      %s80 = sphi 0, %s78
      %s81 = sphi 0, %s80
      %s95 = sphi 0, %s81
      %s99 = sphi 0, %s99
      %s101 = sphi 0, %s99
      %s102 = sphi 0, %s101
      %s116 = sphi 0, %s102
      %s120 = sphi 0, %s120
      %s122 = sphi 0, %s120
      %s123 = sphi 0, %s122
      %s137 = sphi 0, %s123
      %s141 = sphi 0, %s141
      %s143 = sphi 0, %s141
      %s144 = sphi 0, %s143
      %s158 = sphi 0, %s144
      %s162 = sphi 0, %s162
      %s164 = sphi 0, %s162
      %s165 = sphi 0, %s164
      %s179 = sphi 0, %s165
      %s183 = sphi 0, %s183
      %s185 = sphi 0, %s183
      %s186 = sphi 0, %s185
      %s200 = sphi 0, %s186
      %s206 = sphi 0, %s208
      %s209 = sphi 0, %s206
      %s210 = sphi 0, %s209
      %s226 = sphi 0, %s210
    $region4: #{tpu_custom_call.1} parent=1 // loop_header_branch
      %21 = sbr.rel (%p19) target = $region8
    $region5: #{tpu_custom_call.1} parent=1 // loop_body
      %s23 = ssub.s32 %s18, 1
      %s24 = ssub.s32 %s18, 2
      %s25 = sadd.s32 %s18, 1
      %s26 = ssub.s32 %s18, %s25
      %p27 = scmp.eq.s32.totalorder %s26, 0
      %s29 = sadd.s32 %s28, 1
      %s30 = scalar_select %p27, %s28, %s29
      %p33 = pneg %p27
      %p34 = scmp.eq.s32.totalorder %s18, 1
      %p35 = por %p33, %p34
      %p36 = scmp.ne.s32.totalorder %s28, %s31
      %p37 = scmp.eq.s32.totalorder %s18, 0
      %p38 = por %p36, %p37
      %p39 = scmp.ne.s32.totalorder %s28, %s31
      %p40 = scmp.eq.s32.totalorder %s23, 1
      %p41 = por %p39, %p40
      %p42 = scmp.ne.s32.totalorder %s31, %s32
      %p43 = scmp.eq.s32.totalorder %s23, 0
      %p44 = por %p42, %p43
      %p45 = scmp.ne.s32.totalorder %s31, %s32
      %p46 = scmp.eq.s32.totalorder %s24, 1
      %p47 = por %p45, %p46
      %p49 = scmp.ne.s32.totalorder %s32, %s48
      %p50 = scmp.eq.s32.totalorder %s24, 0
      %p51 = por %p49, %p50
      %s52 = ssub.s32 %s18, %s25
      %p53 = scmp.eq.s32.totalorder %s52, 0
      %s55 = sadd.s32 %s54, 1
      %s56 = scalar_select %p53, %s54, %s55
      %p59 = pneg %p53
      %p60 = scmp.eq.s32.totalorder %s18, 1
      %p61 = por %p59, %p60
      %p62 = scmp.ne.s32.totalorder %s54, %s57
      %p63 = scmp.eq.s32.totalorder %s18, 0
      %p64 = por %p62, %p63
      %p65 = scmp.ne.s32.totalorder %s54, %s57
      %p66 = scmp.eq.s32.totalorder %s23, 1
      %p67 = por %p65, %p66
      %p68 = scmp.ne.s32.totalorder %s57, %s58
      %p69 = scmp.eq.s32.totalorder %s23, 0
      %p70 = por %p68, %p69
      %p71 = scmp.ne.s32.totalorder %s57, %s58
      %p72 = scmp.eq.s32.totalorder %s24, 1
      %p73 = por %p71, %p72
      %p75 = scmp.ne.s32.totalorder %s58, %s74
      %p76 = scmp.eq.s32.totalorder %s24, 0
      %p77 = por %p75, %p76
      %s79 = sadd.s32 %s78, 1
      %p82 = scmp.eq.s32.totalorder %s18, 1
      %p83 = scmp.ne.s32.totalorder %s78, %s80
      %p84 = scmp.eq.s32.totalorder %s18, 0
      %p85 = por %p83, %p84
      %p86 = scmp.ne.s32.totalorder %s78, %s80
      %p87 = scmp.eq.s32.totalorder %s23, 1
      %p88 = por %p86, %p87
      %p89 = scmp.ne.s32.totalorder %s80, %s81
      %p90 = scmp.eq.s32.totalorder %s23, 0
      %p91 = por %p89, %p90
      %p92 = scmp.ne.s32.totalorder %s80, %s81
      %p93 = scmp.eq.s32.totalorder %s24, 1
      %p94 = por %p92, %p93
      %p96 = scmp.ne.s32.totalorder %s81, %s95
      %p97 = scmp.eq.s32.totalorder %s24, 0
      %p98 = por %p96, %p97
      %s100 = sadd.s32 %s99, 1
      %p103 = scmp.eq.s32.totalorder %s18, 1
      %p104 = scmp.ne.s32.totalorder %s99, %s101
      %p105 = scmp.eq.s32.totalorder %s18, 0
      %p106 = por %p104, %p105
      %p107 = scmp.ne.s32.totalorder %s99, %s101
      %p108 = scmp.eq.s32.totalorder %s23, 1
      %p109 = por %p107, %p108
      %p110 = scmp.ne.s32.totalorder %s101, %s102
      %p111 = scmp.eq.s32.totalorder %s23, 0
      %p112 = por %p110, %p111
      %p113 = scmp.ne.s32.totalorder %s101, %s102
      %p114 = scmp.eq.s32.totalorder %s24, 1
      %p115 = por %p113, %p114
      %p117 = scmp.ne.s32.totalorder %s102, %s116
      %p118 = scmp.eq.s32.totalorder %s24, 0
      %p119 = por %p117, %p118
      %s121 = sadd.s32 %s120, 1
      %p124 = scmp.eq.s32.totalorder %s18, 1
      %p125 = scmp.ne.s32.totalorder %s120, %s122
      %p126 = scmp.eq.s32.totalorder %s18, 0
      %p127 = por %p125, %p126
      %p128 = scmp.ne.s32.totalorder %s120, %s122
      %p129 = scmp.eq.s32.totalorder %s23, 1
      %p130 = por %p128, %p129
      %p131 = scmp.ne.s32.totalorder %s122, %s123
      %p132 = scmp.eq.s32.totalorder %s23, 0
      %p133 = por %p131, %p132
      %p134 = scmp.ne.s32.totalorder %s122, %s123
      %p135 = scmp.eq.s32.totalorder %s24, 1
      %p136 = por %p134, %p135
      %p138 = scmp.ne.s32.totalorder %s123, %s137
      %p139 = scmp.eq.s32.totalorder %s24, 0
      %p140 = por %p138, %p139
      %s142 = sadd.s32 %s141, 1
      %p145 = scmp.eq.s32.totalorder %s18, 1
      %p146 = scmp.ne.s32.totalorder %s141, %s143
      %p147 = scmp.eq.s32.totalorder %s18, 0
      %p148 = por %p146, %p147
      %p149 = scmp.ne.s32.totalorder %s141, %s143
      %p150 = scmp.eq.s32.totalorder %s23, 1
      %p151 = por %p149, %p150
      %p152 = scmp.ne.s32.totalorder %s143, %s144
      %p153 = scmp.eq.s32.totalorder %s23, 0
      %p154 = por %p152, %p153
      %p155 = scmp.ne.s32.totalorder %s143, %s144
      %p156 = scmp.eq.s32.totalorder %s24, 1
      %p157 = por %p155, %p156
      %p159 = scmp.ne.s32.totalorder %s144, %s158
      %p160 = scmp.eq.s32.totalorder %s24, 0
      %p161 = por %p159, %p160
      %s163 = sadd.s32 %s162, 1
      %p166 = scmp.eq.s32.totalorder %s18, 1
      %p167 = scmp.ne.s32.totalorder %s162, %s164
      %p168 = scmp.eq.s32.totalorder %s18, 0
      %p169 = por %p167, %p168
      %p170 = scmp.ne.s32.totalorder %s162, %s164
      %p171 = scmp.eq.s32.totalorder %s23, 1
      %p172 = por %p170, %p171
      %p173 = scmp.ne.s32.totalorder %s164, %s165
      %p174 = scmp.eq.s32.totalorder %s23, 0
      %p175 = por %p173, %p174
      %p176 = scmp.ne.s32.totalorder %s164, %s165
      %p177 = scmp.eq.s32.totalorder %s24, 1
      %p178 = por %p176, %p177
      %p180 = scmp.ne.s32.totalorder %s165, %s179
      %p181 = scmp.eq.s32.totalorder %s24, 0
      %p182 = por %p180, %p181
      %s184 = sadd.s32 %s183, 1
      %p187 = scmp.eq.s32.totalorder %s18, 1
      %p188 = scmp.ne.s32.totalorder %s183, %s185
      %p189 = scmp.eq.s32.totalorder %s18, 0
      %p190 = por %p188, %p189
      %p191 = scmp.ne.s32.totalorder %s183, %s185
      %p192 = scmp.eq.s32.totalorder %s23, 1
      %p193 = por %p191, %p192
      %p194 = scmp.ne.s32.totalorder %s185, %s186
      %p195 = scmp.eq.s32.totalorder %s23, 0
      %p196 = por %p194, %p195
      %p197 = scmp.ne.s32.totalorder %s185, %s186
      %p198 = scmp.eq.s32.totalorder %s24, 1
      %p199 = por %p197, %p198
      %p201 = scmp.ne.s32.totalorder %s186, %s200
      %p202 = scmp.eq.s32.totalorder %s24, 0
      %p203 = por %p201, %p202
      %s204 = ssub.s32 %s18, %s25
      %p205 = scmp.eq.s32.totalorder %s204, 0
      %s207 = sadd.s32 %s206, 1
      %s208 = scalar_select %p205, %s206, %s207
      %p211 = pneg %p205
      %p212 = scmp.eq.s32.totalorder %s18, 1
      %p213 = por %p211, %p212
      %p214 = scmp.ne.s32.totalorder %s206, %s209
      %p215 = scmp.eq.s32.totalorder %s18, 0
      %p216 = por %p214, %p215
      %p217 = scmp.ne.s32.totalorder %s206, %s209
      %p218 = scmp.eq.s32.totalorder %s23, 1
      %p219 = por %p217, %p218
      %p220 = scmp.ne.s32.totalorder %s209, %s210
      %p221 = scmp.eq.s32.totalorder %s23, 0
      %p222 = por %p220, %p221
      %p223 = scmp.ne.s32.totalorder %s209, %s210
      %p224 = scmp.eq.s32.totalorder %s24, 1
      %p225 = por %p223, %p224
      %p227 = scmp.ne.s32.totalorder %s210, %s226
      %p228 = scmp.eq.s32.totalorder %s24, 0
      %p229 = por %p227, %p228
      %p230 = scmp.le.s32.totalorder 1, %s18
      %p231 = scmp.lt.s32.totalorder %s18, 3
      %p232 = pnand %p230, %p231
      %p233 = pneg %p232
      // Predicated region
      $region9: #{tpu_custom_call.1} parent=5 // pred_check
        _
      $region10: #{tpu_custom_call.1} parent=5 // pred_check_branch
        %235 = sbr.rel (%p232) target = $region12
      $region11: #{tpu_custom_call.1} parent=5 // pred_region
        %s236 = ssub.s32 %s18, 1
        // Predicated region
        $region13: #{tpu_custom_call.1} parent=11 // pred_check
          %p237 = pneg %p91
        $region14: #{tpu_custom_call.1} parent=11 // pred_check_branch
          %239 = sbr.rel (%p237) target = $region16
        $region15: #{tpu_custom_call.1} parent=11 // pred_region
          _
        $region16: #{tpu_custom_call.1} parent=11 // pred_fallthru
          _
        // Predicated region
        $region17: #{tpu_custom_call.1} parent=11 // pred_check
          %p240 = pneg %p112
        $region18: #{tpu_custom_call.1} parent=11 // pred_check_branch
          %242 = sbr.rel (%p240) target = $region20
        $region19: #{tpu_custom_call.1} parent=11 // pred_region
          _
        $region20: #{tpu_custom_call.1} parent=11 // pred_fallthru
          _
        // Predicated region
        $region21: #{tpu_custom_call.1} parent=11 // pred_check
          %p243 = pneg %p133
        $region22: #{tpu_custom_call.1} parent=11 // pred_check_branch
          %245 = sbr.rel (%p243) target = $region24
        $region23: #{tpu_custom_call.1} parent=11 // pred_region
          %s247 = ssub.s32 8192, 8192
          %248 = vsyncadd [#allocation3], %s247
          %s249 = sshll.u32 [#allocation2], 4
          %s250 = int_to_ptr.vmem [resolvable:$true] %s249
          %255 = dma.hbm_to_vmem [thread:$0]  %s4, 8192, %s250, [#allocation3], 256, 256, 16
        $region24: #{tpu_custom_call.1} parent=11 // pred_fallthru
          _
        // Predicated region
        $region25: #{tpu_custom_call.1} parent=11 // pred_check
          %p256 = pneg %p154
        $region26: #{tpu_custom_call.1} parent=11 // pred_check_branch
          %258 = sbr.rel (%p256) target = $region28
        $region27: #{tpu_custom_call.1} parent=11 // pred_region
          _
        $region28: #{tpu_custom_call.1} parent=11 // pred_fallthru
          _
        // Predicated region
        $region29: #{tpu_custom_call.1} parent=11 // pred_check
          %p259 = pneg %p175
        $region30: #{tpu_custom_call.1} parent=11 // pred_check_branch
          %261 = sbr.rel (%p259) target = $region32
        $region31: #{tpu_custom_call.1} parent=11 // pred_region
          _
        $region32: #{tpu_custom_call.1} parent=11 // pred_fallthru
          _
        // Predicated region
        $region33: #{tpu_custom_call.1} parent=11 // pred_check
          %p262 = pneg %p196
        $region34: #{tpu_custom_call.1} parent=11 // pred_check_branch
          %264 = sbr.rel (%p262) target = $region36
        $region35: #{tpu_custom_call.1} parent=11 // pred_region
          _
        $region36: #{tpu_custom_call.1} parent=11 // pred_fallthru
          _
      $region12: #{tpu_custom_call.1} parent=5 // pred_fallthru
        _
      %p265 = scmp.lt.s32.totalorder %s18, 2
      // Predicated region
      $region37: #{tpu_custom_call.1} parent=5 // pred_check
        %p266 = pneg %p265
      $region38: #{tpu_custom_call.1} parent=5 // pred_check_branch
        %268 = sbr.rel (%p266) target = $region40
      $region39: #{tpu_custom_call.1} parent=5 // pred_region
        // Predicated region
        $region41: #{tpu_custom_call.1} parent=39 // pred_check
          %p269 = pneg %p38
        $region42: #{tpu_custom_call.1} parent=39 // pred_check_branch
          %271 = sbr.rel (%p269) target = $region44
        $region43: #{tpu_custom_call.1} parent=39 // pred_region
          %p272 = scmp.lt.s32.totalorder %s18, 1
          %s273 = scalar_select %p272, %s18, 1
          %s274 = smul.addr %s273, 8
          %s275 = scalar_lea.vmem %s0, %s274
        $region44: #{tpu_custom_call.1} parent=39 // pred_fallthru
          _
        // Predicated region
        $region45: #{tpu_custom_call.1} parent=39 // pred_check
          %p276 = pneg %p64
        $region46: #{tpu_custom_call.1} parent=39 // pred_check_branch
          %278 = sbr.rel (%p276) target = $region48
        $region47: #{tpu_custom_call.1} parent=39 // pred_region
          %p279 = scmp.lt.s32.totalorder %s18, 1
          %s280 = scalar_select %p279, %s18, 1
          %s281 = smul.addr %s280, 8
          %s282 = scalar_lea.vmem %s1, %s281
        $region48: #{tpu_custom_call.1} parent=39 // pred_fallthru
          _
      $region40: #{tpu_custom_call.1} parent=5 // pred_fallthru
        _
      %p283 = scmp.le.s32.totalorder 1, %s18
      %p284 = scmp.lt.s32.totalorder %s18, 3
      %p285 = pnand %p283, %p284
      %p286 = pneg %p285
      // Predicated region
      $region49: #{tpu_custom_call.1} parent=5 // pred_check
        _
      $region50: #{tpu_custom_call.1} parent=5 // pred_check_branch
        %288 = sbr.rel (%p285) target = $region52
      $region51: #{tpu_custom_call.1} parent=5 // pred_region
        %s289 = ssub.s32 %s18, 1
        // Predicated region
        $region53: #{tpu_custom_call.1} parent=51 // pred_check
          %p290 = pneg %p133
        $region54: #{tpu_custom_call.1} parent=51 // pred_check_branch
          %292 = sbr.rel (%p290) target = $region56
        $region55: #{tpu_custom_call.1} parent=51 // pred_region
          %293 = dma.done [#allocation3], 8192
        $region56: #{tpu_custom_call.1} parent=51 // pred_fallthru
          _
        %p294 = scmp.lt.s32.totalorder %s23, 1
        %s295 = scalar_select %p294, %s23, 1
        %s296 = smul.addr %s295, 8
        %s297 = scalar_lea.vmem %s0, %s296
        %p298 = pneg %p44
        %p299 = pneg %p41
        %p300 = scmp.lt.s32.totalorder %s23, 1
        %s301 = scalar_select %p300, %s23, 1
        %s302 = smul.addr %s301, 8
        %s303 = scalar_lea.vmem %s1, %s302
        %p304 = pneg %p70
        %p305 = pneg %p67
        %p306 = pneg %p91
        %p307 = pneg %p88
        %p308 = pneg %p112
        %p309 = pneg %p109
        %p310 = pneg %p133
        %p311 = pneg %p130
        %p312 = pneg %p154
        %p313 = pneg %p151
        %p314 = pneg %p175
        %p315 = pneg %p172
        %p316 = pneg %p196
        %p317 = pneg %p193
        %p318 = pneg %p222
        %p319 = pneg %p219
        %s320 = sand.u32 %s209, 1
        %s321 = scalar_lea.sflag [#allocation4], %s320
        %s322 = sand.u32 %s209, 1
        %s323 = smul.addr %s322, 8
        %s324 = scalar_lea.vmem [#allocation5], %s323
        %p325 = scmp.lt.s32.totalorder %s23, 1
        %s326 = scalar_select %p325, %s23, 1
        %s327 = smul.addr %s326, 8
        %s328 = scalar_lea.vmem %s0, %s327
        %p329 = scmp.lt.s32.totalorder %s23, 1
        %s330 = scalar_select %p329, %s23, 1
        %s331 = smul.addr %s330, 8
        %s332 = scalar_lea.vmem %s1, %s331
        %v333 = vld [vmem:[%s328] sm:$0xff]
        %v334 = vld [vmem:[%s332] sm:$0xff]
        %336 = vrot.lane.b32.xlu0 %v334, 16
        %v337 = vpop.permute.xlu0 %336
        %vm339 = vcmask 130048
        %v340 = vsel %vm339, %v333, %v337
        %v341 = vld [vmem:[%s2] sm:$0xff]
        %v342 = vld [vmem:[%s2 + $0x8] sm:$0xff]
        %v343 = vld [vmem:[%s2 + $0x10] sm:$0xff]
        %v344 = vld [vmem:[%s2 + $0x18] sm:$0xff]
        %v345 = vld [vmem:[%s2 + $0x20] sm:$0xff]
        %v346 = vld [vmem:[%s2 + $0x28] sm:$0xff]
        %v347 = vld [vmem:[%s3] sm:$0x3]
        %v349 = vlaneseq
        %v350 = vshrl.u32 %v349, 7
        %v351 = vsub.s32 0, %v350
        %v352 = vrot.slane %v347, %v351
        %v353 = vlaneseq
        %v354 = vshrl.u32 %v353, 7
        %v355 = vsub.s32 1, %v354
        %v356 = vrot.slane %v347, %v355
        %vm359 = vcmask 195584
        %v361 = vsel %vm359, %v340, 0
        %363 = vmatprep.subr.mxu0 0.0
        %364 = vmatpush1.msra.mxu0 0.0
        %365 = vmatprep.subr.mxu0 0.0
        %366 = vmatpush1.msra.mxu0 0.0
        %367 = vmatprep.subr.mxu0 0.0
        %368 = vmatpush1.msra.mxu0 0.0
        %369 = vmatprep.subr.mxu0 0.0
        %370 = vmatpush1.msra.mxu0 0.0
        %371 = vmatprep.subr.mxu0 0.0
        %372 = vmatpush1.msra.mxu0 0.0
        %373 = vmatprep.subr.mxu0 0.0
        %374 = vmatpush1.msra.mxu0 0.0
        %375 = vmatprep.subr.mxu0 0.0
        %376 = vmatpush1.msra.mxu0 0.0
        %377 = vmatprep.subr.mxu0 0.0
        %378 = vmatpush1.msra.mxu0 0.0
        %379 = vmatprep.subr.mxu0 0.0
        %380 = vmatpush1.msra.mxu0 0.0
        %381 = vmatprep.subr.mxu0 0.0
        %382 = vmatpush1.msra.mxu0 0.0
        %383 = vmatprep.subr.mxu0 0.0
        %384 = vmatpush1.msra.mxu0 0.0
        %385 = vmatprep.subr.mxu0 0.0
        %386 = vmatpush1.msra.mxu0 0.0
        %387 = vmatprep.subr.mxu0 0.0
        %388 = vmatpush1.msra.mxu0 0.0
        %389 = vmatprep.subr.mxu0 %v346
        %390 = vmatpush1.msra.mxu0 %v345
        %391 = vmatprep.subr.mxu0 %v344
        %392 = vmatpush1.msra.mxu0 %v343
        %393 = vmatprep.subr.mxu0 %v342
        %394 = vmatpush1.msra.mxu0 %v341
        %395 = vmatprep.subr.mxu0 0.0
        %396 = vmatpush2.msra.mxu0 0.0
        %397 = vmatprep.subr.mxu0 0.0
        %398 = vmatpush2.msra.mxu0 0.0
        %399 = vmatprep.subr.mxu0 0.0
        %400 = vmatpush2.msra.mxu0 0.0
        %401 = vmatprep.subr.mxu0 0.0
        %402 = vmatpush2.msra.mxu0 0.0
        %403 = vmatprep.subr.mxu0 0.0
        %404 = vmatpush2.msra.mxu0 0.0
        %405 = vmatprep.subr.mxu0 0.0
        %406 = vmatpush2.msra.mxu0 0.0
        %407 = vmatprep.subr.mxu0 0.0
        %408 = vmatpush2.msra.mxu0 0.0
        %409 = vmatprep.subr.mxu0 0.0
        %410 = vmatpush2.msra.mxu0 0.0
        %411 = vmatprep.subr.mxu0 0.0
        %412 = vmatpush2.msra.mxu0 0.0
        %413 = vmatprep.subr.mxu0 0.0
        %414 = vmatpush2.msra.mxu0 0.0
        %415 = vmatprep.subr.mxu0 0.0
        %416 = vmatpush2.msra.mxu0 0.0
        %417 = vmatprep.subr.mxu0 0.0
        %418 = vmatpush2.msra.mxu0 0.0
        %419 = vmatprep.subr.mxu0 0.0
        %420 = vmatpush2.msra.mxu0 0.0
        %421 = vmatprep.subr.mxu0 0.0
        %422 = vmatpush2.msra.mxu0 0.0
        %423 = vmatprep.subr.mxu0 0.0
        %424 = vmatpush2.msra.mxu0 0.0
        %425 = vmatprep.subr.mxu0 0.0
        %426 = vmatpush2.msra.mxu0 0.0
        %427 = vmatprep.mubr.f32.mxu0 0.0
        %428 = vmatmul.mubr.f32.gmra.mxu0 %v361
        %v429 = vpop.f32.mrf.mxu0
        %v430 = vadd.f32 %v352, %v429
        %v431 = vpop.f32.mrf.mxu0
        %v432 = vadd.f32 %v356, %v431
        %433 = vdwg.mxu0
        %v434 = vmax.f32 %v430, 0.0
        %v435 = vmax.f32 %v432, 0.0
        %v436 = vld [vmem:[#allocation2] sm:$0xff]
        %v437 = vld [vmem:[#allocation2 + $0x8] sm:$0xff]
        %v438 = vld [vmem:[#allocation2 + $0x10] sm:$0xff]
        %v439 = vld [vmem:[#allocation2 + $0x18] sm:$0xff]
        %v440 = vld [vmem:[#allocation2 + $0x20] sm:$0xff]
        %v441 = vld [vmem:[#allocation2 + $0x28] sm:$0xff]
        %v442 = vld [vmem:[#allocation2 + $0x30] sm:$0xff]
        %v443 = vld [vmem:[#allocation2 + $0x38] sm:$0xff]
        %v444 = vld [vmem:[#allocation2 + $0x40] sm:$0xff]
        %v445 = vld [vmem:[#allocation2 + $0x48] sm:$0xff]
        %v446 = vld [vmem:[#allocation2 + $0x50] sm:$0xff]
        %v447 = vld [vmem:[#allocation2 + $0x58] sm:$0xff]
        %v448 = vld [vmem:[#allocation2 + $0x60] sm:$0xff]
        %v449 = vld [vmem:[#allocation2 + $0x68] sm:$0xff]
        %v450 = vld [vmem:[#allocation2 + $0x70] sm:$0xff]
        %v451 = vld [vmem:[#allocation2 + $0x78] sm:$0xff]
        %v452 = vld [vmem:[#allocation2 + $0x80] sm:$0xff]
        %v453 = vld [vmem:[#allocation2 + $0x88] sm:$0xff]
        %v454 = vld [vmem:[#allocation2 + $0x90] sm:$0xff]
        %v455 = vld [vmem:[#allocation2 + $0x98] sm:$0xff]
        %v456 = vld [vmem:[#allocation2 + $0xa0] sm:$0xff]
        %v457 = vld [vmem:[#allocation2 + $0xa8] sm:$0xff]
        %v458 = vld [vmem:[#allocation2 + $0xb0] sm:$0xff]
        %v459 = vld [vmem:[#allocation2 + $0xb8] sm:$0xff]
        %v460 = vld [vmem:[#allocation2 + $0xc0] sm:$0xff]
        %v461 = vld [vmem:[#allocation2 + $0xc8] sm:$0xff]
        %v462 = vld [vmem:[#allocation2 + $0xd0] sm:$0xff]
        %v463 = vld [vmem:[#allocation2 + $0xd8] sm:$0xff]
        %v464 = vld [vmem:[#allocation2 + $0xe0] sm:$0xff]
        %v465 = vld [vmem:[#allocation2 + $0xe8] sm:$0xff]
        %v466 = vld [vmem:[#allocation2 + $0xf0] sm:$0xff]
        %v467 = vld [vmem:[#allocation2 + $0xf8] sm:$0xff]
        %v468 = vld [vmem:[#allocation2 + $0x100] sm:$0xff]
        %v469 = vld [vmem:[#allocation2 + $0x108] sm:$0xff]
        %v470 = vld [vmem:[#allocation2 + $0x110] sm:$0xff]
        %v471 = vld [vmem:[#allocation2 + $0x118] sm:$0xff]
        %v472 = vld [vmem:[#allocation2 + $0x120] sm:$0xff]
        %v473 = vld [vmem:[#allocation2 + $0x128] sm:$0xff]
        %v474 = vld [vmem:[#allocation2 + $0x130] sm:$0xff]
        %v475 = vld [vmem:[#allocation2 + $0x138] sm:$0xff]
        %v476 = vld [vmem:[#allocation2 + $0x140] sm:$0xff]
        %v477 = vld [vmem:[#allocation2 + $0x148] sm:$0xff]
        %v478 = vld [vmem:[#allocation2 + $0x150] sm:$0xff]
        %v479 = vld [vmem:[#allocation2 + $0x158] sm:$0xff]
        %v480 = vld [vmem:[#allocation2 + $0x160] sm:$0xff]
        %v481 = vld [vmem:[#allocation2 + $0x168] sm:$0xff]
        %v482 = vld [vmem:[#allocation2 + $0x170] sm:$0xff]
        %v483 = vld [vmem:[#allocation2 + $0x178] sm:$0xff]
        %v484 = vld [vmem:[#allocation2 + $0x180] sm:$0xff]
        %v485 = vld [vmem:[#allocation2 + $0x188] sm:$0xff]
        %v486 = vld [vmem:[#allocation2 + $0x190] sm:$0xff]
        %v487 = vld [vmem:[#allocation2 + $0x198] sm:$0xff]
        %v488 = vld [vmem:[#allocation2 + $0x1a0] sm:$0xff]
        %v489 = vld [vmem:[#allocation2 + $0x1a8] sm:$0xff]
        %v490 = vld [vmem:[#allocation2 + $0x1b0] sm:$0xff]
        %v491 = vld [vmem:[#allocation2 + $0x1b8] sm:$0xff]
        %v492 = vld [vmem:[#allocation2 + $0x1c0] sm:$0xff]
        %v493 = vld [vmem:[#allocation2 + $0x1c8] sm:$0xff]
        %v494 = vld [vmem:[#allocation2 + $0x1d0] sm:$0xff]
        %v495 = vld [vmem:[#allocation2 + $0x1d8] sm:$0xff]
        %v496 = vld [vmem:[#allocation2 + $0x1e0] sm:$0xff]
        %v497 = vld [vmem:[#allocation2 + $0x1e8] sm:$0xff]
        %v498 = vld [vmem:[#allocation2 + $0x1f0] sm:$0xff]
        %v499 = vld [vmem:[#allocation2 + $0x1f8] sm:$0xff]
        %v500 = vld [vmem:[%s5] sm:$0x3]
        %v502 = vlaneseq
        %v503 = vshrl.u32 %v502, 7
        %v504 = vsub.s32 0, %v503
        %v505 = vrot.slane %v500, %v504
        %v506 = vlaneseq
        %v507 = vshrl.u32 %v506, 7
        %v508 = vsub.s32 1, %v507
        %v509 = vrot.slane %v500, %v508
        %512 = vmatprep.subr.mxu0 %v467
        %513 = vmatpush1.msra.mxu0 %v466
        %514 = vmatprep.subr.mxu0 %v465
        %515 = vmatpush1.msra.mxu0 %v464
        %516 = vmatprep.subr.mxu0 %v463
        %517 = vmatpush1.msra.mxu0 %v462
        %518 = vmatprep.subr.mxu0 %v461
        %519 = vmatpush1.msra.mxu0 %v460
        %520 = vmatprep.subr.mxu0 %v459
        %521 = vmatpush1.msra.mxu0 %v458
        %522 = vmatprep.subr.mxu0 %v457
        %523 = vmatpush1.msra.mxu0 %v456
        %524 = vmatprep.subr.mxu0 %v455
        %525 = vmatpush1.msra.mxu0 %v454
        %526 = vmatprep.subr.mxu0 %v453
        %527 = vmatpush1.msra.mxu0 %v452
        %528 = vmatprep.subr.mxu0 %v451
        %529 = vmatpush1.msra.mxu0 %v450
        %530 = vmatprep.subr.mxu0 %v449
        %531 = vmatpush1.msra.mxu0 %v448
        %532 = vmatprep.subr.mxu0 %v447
        %533 = vmatpush1.msra.mxu0 %v446
        %534 = vmatprep.subr.mxu0 %v445
        %535 = vmatpush1.msra.mxu0 %v444
        %536 = vmatprep.subr.mxu0 %v443
        %537 = vmatpush1.msra.mxu0 %v442
        %538 = vmatprep.subr.mxu0 %v441
        %539 = vmatpush1.msra.mxu0 %v440
        %540 = vmatprep.subr.mxu0 %v439
        %541 = vmatpush1.msra.mxu0 %v438
        %542 = vmatprep.subr.mxu0 %v437
        %543 = vmatpush1.msra.mxu0 %v436
        %544 = vmatprep.subr.mxu0 %v499
        %545 = vmatpush2.msra.mxu0 %v498
        %546 = vmatprep.subr.mxu0 %v497
        %547 = vmatpush2.msra.mxu0 %v496
        %548 = vmatprep.subr.mxu0 %v495
        %549 = vmatpush2.msra.mxu0 %v494
        %550 = vmatprep.subr.mxu0 %v493
        %551 = vmatpush2.msra.mxu0 %v492
        %552 = vmatprep.subr.mxu0 %v491
        %553 = vmatpush2.msra.mxu0 %v490
        %554 = vmatprep.subr.mxu0 %v489
        %555 = vmatpush2.msra.mxu0 %v488
        %556 = vmatprep.subr.mxu0 %v487
        %557 = vmatpush2.msra.mxu0 %v486
        %558 = vmatprep.subr.mxu0 %v485
        %559 = vmatpush2.msra.mxu0 %v484
        %560 = vmatprep.subr.mxu0 %v483
        %561 = vmatpush2.msra.mxu0 %v482
        %562 = vmatprep.subr.mxu0 %v481
        %563 = vmatpush2.msra.mxu0 %v480
        %564 = vmatprep.subr.mxu0 %v479
        %565 = vmatpush2.msra.mxu0 %v478
        %566 = vmatprep.subr.mxu0 %v477
        %567 = vmatpush2.msra.mxu0 %v476
        %568 = vmatprep.subr.mxu0 %v475
        %569 = vmatpush2.msra.mxu0 %v474
        %570 = vmatprep.subr.mxu0 %v473
        %571 = vmatpush2.msra.mxu0 %v472
        %572 = vmatprep.subr.mxu0 %v471
        %573 = vmatpush2.msra.mxu0 %v470
        %574 = vmatprep.subr.mxu0 %v469
        %575 = vmatpush2.msra.mxu0 %v468
        %576 = vmatprep.mubr.f32.mxu0 %v435
        %577 = vmatmul.mubr.f32.gmra.mxu0 %v434
        %v578 = vpop.f32.mrf.mxu0
        %v579 = vadd.f32 %v505, %v578
        %v580 = vpop.f32.mrf.mxu0
        %v581 = vadd.f32 %v509, %v580
        %582 = vdwg.mxu0
        %v583 = vmax.f32 %v579, 0.0
        %v584 = vmax.f32 %v581, 0.0
        %v585 = vld [vmem:[%s6] sm:$0xff]
        %v586 = vld [vmem:[%s6 + $0x8] sm:$0xff]
        %v587 = vld [vmem:[%s6 + $0x10] sm:$0xff]
        %v588 = vld [vmem:[%s6 + $0x18] sm:$0xff]
        %v589 = vld [vmem:[%s6 + $0x20] sm:$0xff]
        %v590 = vld [vmem:[%s6 + $0x28] sm:$0xff]
        %v591 = vld [vmem:[%s6 + $0x30] sm:$0xff]
        %v592 = vld [vmem:[%s6 + $0x38] sm:$0xff]
        %v593 = vld [vmem:[%s6 + $0x40] sm:$0xff]
        %v594 = vld [vmem:[%s6 + $0x48] sm:$0xff]
        %v595 = vld [vmem:[%s6 + $0x50] sm:$0xff]
        %v596 = vld [vmem:[%s6 + $0x58] sm:$0xff]
        %v597 = vld [vmem:[%s6 + $0x60] sm:$0xff]
        %v598 = vld [vmem:[%s6 + $0x68] sm:$0xff]
        %v599 = vld [vmem:[%s6 + $0x70] sm:$0xff]
        %v600 = vld [vmem:[%s6 + $0x78] sm:$0xff]
        %v601 = vld [vmem:[%s6 + $0x80] sm:$0xff]
        %v602 = vld [vmem:[%s6 + $0x88] sm:$0xff]
        %v603 = vld [vmem:[%s6 + $0x90] sm:$0xff]
        %v604 = vld [vmem:[%s6 + $0x98] sm:$0xff]
        %v605 = vld [vmem:[%s6 + $0xa0] sm:$0xff]
        %v606 = vld [vmem:[%s6 + $0xa8] sm:$0xff]
        %v607 = vld [vmem:[%s6 + $0xb0] sm:$0xff]
        %v608 = vld [vmem:[%s6 + $0xb8] sm:$0xff]
        %v609 = vld [vmem:[%s6 + $0xc0] sm:$0xff]
        %v610 = vld [vmem:[%s6 + $0xc8] sm:$0xff]
        %v611 = vld [vmem:[%s6 + $0xd0] sm:$0xff]
        %v612 = vld [vmem:[%s6 + $0xd8] sm:$0xff]
        %v613 = vld [vmem:[%s6 + $0xe0] sm:$0xff]
        %v614 = vld [vmem:[%s6 + $0xe8] sm:$0xff]
        %v615 = vld [vmem:[%s6 + $0xf0] sm:$0xff]
        %v616 = vld [vmem:[%s6 + $0xf8] sm:$0xff]
        %v617 = vld [vmem:[%s7] sm:$0x1]
        %v619 = vlaneseq
        %v620 = vshrl.u32 %v619, 7
        %v621 = vsub.s32 0, %v620
        %v622 = vrot.slane %v617, %v621
        %624 = vmatprep.subr.mxu0 0.0
        %625 = vmatpush1.msra.mxu0 %v600
        %626 = vmatprep.subr.mxu0 0.0
        %627 = vmatpush1.msra.mxu0 %v599
        %628 = vmatprep.subr.mxu0 0.0
        %629 = vmatpush1.msra.mxu0 %v598
        %630 = vmatprep.subr.mxu0 0.0
        %631 = vmatpush1.msra.mxu0 %v597
        %632 = vmatprep.subr.mxu0 0.0
        %633 = vmatpush1.msra.mxu0 %v596
        %634 = vmatprep.subr.mxu0 0.0
        %635 = vmatpush1.msra.mxu0 %v595
        %636 = vmatprep.subr.mxu0 0.0
        %637 = vmatpush1.msra.mxu0 %v594
        %638 = vmatprep.subr.mxu0 0.0
        %639 = vmatpush1.msra.mxu0 %v593
        %640 = vmatprep.subr.mxu0 0.0
        %641 = vmatpush1.msra.mxu0 %v592
        %642 = vmatprep.subr.mxu0 0.0
        %643 = vmatpush1.msra.mxu0 %v591
        %644 = vmatprep.subr.mxu0 0.0
        %645 = vmatpush1.msra.mxu0 %v590
        %646 = vmatprep.subr.mxu0 0.0
        %647 = vmatpush1.msra.mxu0 %v589
        %648 = vmatprep.subr.mxu0 0.0
        %649 = vmatpush1.msra.mxu0 %v588
        %650 = vmatprep.subr.mxu0 0.0
        %651 = vmatpush1.msra.mxu0 %v587
        %652 = vmatprep.subr.mxu0 0.0
        %653 = vmatpush1.msra.mxu0 %v586
        %654 = vmatprep.subr.mxu0 0.0
        %655 = vmatpush1.msra.mxu0 %v585
        %656 = vmatprep.subr.mxu0 0.0
        %657 = vmatpush2.msra.mxu0 %v616
        %658 = vmatprep.subr.mxu0 0.0
        %659 = vmatpush2.msra.mxu0 %v615
        %660 = vmatprep.subr.mxu0 0.0
        %661 = vmatpush2.msra.mxu0 %v614
        %662 = vmatprep.subr.mxu0 0.0
        %663 = vmatpush2.msra.mxu0 %v613
        %664 = vmatprep.subr.mxu0 0.0
        %665 = vmatpush2.msra.mxu0 %v612
        %666 = vmatprep.subr.mxu0 0.0
        %667 = vmatpush2.msra.mxu0 %v611
        %668 = vmatprep.subr.mxu0 0.0
        %669 = vmatpush2.msra.mxu0 %v610
        %670 = vmatprep.subr.mxu0 0.0
        %671 = vmatpush2.msra.mxu0 %v609
        %672 = vmatprep.subr.mxu0 0.0
        %673 = vmatpush2.msra.mxu0 %v608
        %674 = vmatprep.subr.mxu0 0.0
        %675 = vmatpush2.msra.mxu0 %v607
        %676 = vmatprep.subr.mxu0 0.0
        %677 = vmatpush2.msra.mxu0 %v606
        %678 = vmatprep.subr.mxu0 0.0
        %679 = vmatpush2.msra.mxu0 %v605
        %680 = vmatprep.subr.mxu0 0.0
        %681 = vmatpush2.msra.mxu0 %v604
        %682 = vmatprep.subr.mxu0 0.0
        %683 = vmatpush2.msra.mxu0 %v603
        %684 = vmatprep.subr.mxu0 0.0
        %685 = vmatpush2.msra.mxu0 %v602
        %686 = vmatprep.subr.mxu0 0.0
        %687 = vmatpush2.msra.mxu0 %v601
        %688 = vmatprep.mubr.f32.mxu0 %v584
        %689 = vmatmul.mubr.f32.gmra.mxu0 %v583
        %v690 = vpop.f32.mrf.mxu0
        %v691 = vadd.f32 %v622, %v690
        %v692 = vpop.f32.mrf.mxu0
        %693 = vdwg.mxu0
        %694 = vst.msk [vmem:[%s324] sm:$0xff] %vm339, %v691
        %s695 = sand.u32 %s209, 1
        %s696 = scalar_lea.sflag [#allocation4], %s695
        %s697 = sand.u32 %s209, 1
        %s698 = smul.addr %s697, 8
        %s699 = scalar_lea.vmem [#allocation5], %s698
        // Predicated region
        $region57: #{tpu_custom_call.1} parent=51 // pred_check
          %p700 = pneg %p219
        $region58: #{tpu_custom_call.1} parent=51 // pred_check_branch
          %702 = sbr.rel (%p700) target = $region60
        $region59: #{tpu_custom_call.1} parent=51 // pred_region
          %s704 = ssub.s32 128, 128
          %705 = vsyncadd %s696, %s704
          %s706 = smul.addr %s23, 128
          %s707 = scalar_lea.hbm %s8, %s706
          %s709 = sshll.u32 %s699, 4
          %s710 = int_to_ptr.vmem [resolvable:$true] %s709
          %712 = dma.vmem_to_hbm [thread:$0]  %s710, 128, %s707, %s696
        $region60: #{tpu_custom_call.1} parent=51 // pred_fallthru
          _
      $region52: #{tpu_custom_call.1} parent=5 // pred_fallthru
        _
      %p713 = scmp.le.s32.totalorder 2, %s18
      // Predicated region
      $region61: #{tpu_custom_call.1} parent=5 // pred_check
        %p714 = pneg %p713
      $region62: #{tpu_custom_call.1} parent=5 // pred_check_branch
        %716 = sbr.rel (%p714) target = $region64
      $region63: #{tpu_custom_call.1} parent=5 // pred_region
        %s717 = ssub.s32 %s18, 2
        // Predicated region
        $region65: #{tpu_custom_call.1} parent=63 // pred_check
          %p718 = pneg %p225
        $region66: #{tpu_custom_call.1} parent=63 // pred_check_branch
          %720 = sbr.rel (%p718) target = $region68
        $region67: #{tpu_custom_call.1} parent=63 // pred_region
          %s721 = sand.u32 %s210, 1
          %s722 = scalar_lea.sflag [#allocation4], %s721
          %s723 = sand.u32 %s210, 1
          %s724 = smul.addr %s723, 8
          %s725 = scalar_lea.vmem [#allocation5], %s724
          %726 = dma.done %s722, 128
        $region68: #{tpu_custom_call.1} parent=63 // pred_fallthru
          _
      $region64: #{tpu_custom_call.1} parent=5 // pred_fallthru
        _
    $region6: #{tpu_custom_call.1} parent=1 // loop_footer
      %s22 = sadd.s32 1, %s18
    $region7: #{tpu_custom_call.1} parent=1 // loop_footer_branch
      %17 = sbr.rel target = $region3
    $region8: #{tpu_custom_call.1} parent=1 // loop_exit
      _
    %727 = vsyncpa [#allocation3], 1
    %s728 = scalar_lea.sflag [#allocation3], 1
    %729 = vsyncpa %s728, 1
    %730 = vsyncpa [#allocation4], 1
    %s731 = scalar_lea.sflag [#allocation4], 1
    %732 = vsyncpa %s731, 1

</llo_original>
